<compile_context>
chip_gen: v7x
topology: tpu7x:2x2x1
jax: 0.10.0
libtpu: 0.0.40
codegen_flags: <defaults>
</compile_context>

<pallas_src>
import functools
from typing import NamedTuple, Optional

import jax
import jax.numpy as jnp
import numpy as np
from jax.experimental import pallas as pl
from jax.experimental.pallas import tpu as pltpu


def _round_up(x: int, m: int) -> int:
    return ((x + m - 1) // m) * m


# ---------------------------------------------------------------------------
# Kernel: one (token_tile, hidden_tile) step of the fused SwiGLU MLP.
# ---------------------------------------------------------------------------
def _mlp_kernel(x_ref, wgu_ref, bgu_ref, wd_ref, bd_ref, o_ref, acc_ref, *, th):
    hh = pl.program_id(1)

    @pl.when(hh == 0)
    def _():
        acc_ref[...] = jnp.zeros_like(acc_ref)

    x = x_ref[...]                                                    # (tm, D)
    # Fused gate|up projection: ONE MXU matmul against the per-tile
    # [Wg_tile | Wu_tile] column block; f32 accumulation on the MXU.
    gu = jnp.dot(x, wgu_ref[...],
                 preferred_element_type=jnp.float32) + bgu_ref[...]   # (tm, 2*th)
    gate = gu[:, :th]                                                 # lane-aligned split
    up = gu[:, th:]
    # SiLU in f32 (EUP sigmoid rides its own VLIW slot, hidden under MXU work).
    hidden = (gate * jax.nn.sigmoid(gate)) * up                       # (tm, th) f32
    acc_ref[...] += jnp.dot(hidden.astype(wd_ref.dtype), wd_ref[...],
                            preferred_element_type=jnp.float32)       # (tm, D)

    @pl.when(hh == pl.num_programs(1) - 1)
    def _():
        o_ref[...] = (acc_ref[...] + bd_ref[...]).astype(o_ref.dtype)


# ---------------------------------------------------------------------------
# Hardware-aware defaults.
# ---------------------------------------------------------------------------
def _hw_config():
    """(tm, th, vmem_limit_bytes, multi_core) defaults per TPU generation.

    Tile rule (weight-streaming roofline): this kernel's arithmetic intensity
    is ~tm flops per weight byte and is independent of th, so prefer a LARGE
    token tile and a moderate hidden tile.
    """
    kind = ""
    try:
        kind = jax.devices()[0].device_kind.lower()
    except Exception:  # pragma: no cover
        pass
    vmem_cap = None
    try:
        vmem_cap = getattr(pltpu.get_tpu_info(), "vmem_capacity_bytes", None)
    except Exception:  # pragma: no cover
        pass

    if "v7" in kind or (vmem_cap is not None and vmem_cap <= (64 << 20)):
        # v7x: 64 MiB VMEM/TC, crit ~310 flop/byte, 2 TensorCores per chip.
        # tm=512/th=512 bf16 @ D=3584 is ~46 MB incl. double buffers + f32 acc.
        return 512, 512, 56 << 20, True
    if "v6" in kind:
        # v6e: 128 MiB VMEM, crit ~650 flop/byte -> big token tile (AI=1024).
        return 1024, 512, 100 << 20, False
    if "v5e" in kind or ("v5" in kind and "lite" in kind):
        # v5e: crit ~240 flop/byte with bf16 weights; tm=512 gives margin.
        return 512, 512, 64 << 20, False
    if vmem_cap is not None and vmem_cap >= (128 << 20):
        # v4 / v5p / unknown large-VMEM chips: generous tiles.
        return 768, 512, 96 << 20, False
    # Unknown hardware: conservative budget that still fits 64 MiB VMEM.
    return 512, 512, 48 << 20, False


# ---------------------------------------------------------------------------
# One-time weight preparation (model init), producing kernel-ready params.
# ---------------------------------------------------------------------------
class MLPParams(NamedTuple):
    wgu: jax.Array   # [D, 2*Hp]  per hidden tile k: cols [2k*th, 2k*th+th)=Wg, next th=Wu
    bgu: jax.Array   # [1, 2*Hp]  f32, same column layout as wgu
    wd: jax.Array    # [Hp, D]
    bd: jax.Array    # [1, D]     f32
    th: int          # hidden tile used for the fused column layout
    hidden: int      # original (unpadded) hidden size


def prepare_mlp_params(wg, bg, wu, bu, wd, bd, *, th: Optional[int] = None,
                       compute_dtype=jnp.bfloat16) -> MLPParams:
    """Prepare weights ONCE (cast / pad / fuse).  Do not call per forward.

    wg, wu: [in_features, hidden]; wd: [hidden, in_features];
    bg, bu: [hidden]; bd: [in_features].
    compute_dtype: MXU dtype (default bf16; None keeps original dtypes).
    """
    d, h = wg.shape
    if th is None:
        th = _hw_config()[1]
    # th must be a multiple of 128 (lane-aligned fused gate/up split).
    th = max(128, (int(th) // 128) * 128)
    th = min(th, _round_up(h, 128))
    hp = _round_up(h, th)
    pad = hp - h

    if compute_dtype is not None:
        wg = wg.astype(compute_dtype)
        wu = wu.astype(compute_dtype)
        wd = wd.astype(compute_dtype)

    if pad:
        # Zero gate/up columns -> gate = 0 -> silu(0) * up = 0, and zero Wd
        # rows -> the padded hidden tail contributes exactly zero to the acc.
        wg = jnp.pad(wg, ((0, 0), (0, pad)))
        wu = jnp.pad(wu, ((0, 0), (0, pad)))
        wd = jnp.pad(wd, ((0, pad), (0, 0)))
    bg = jnp.pad(bg.reshape(-1).astype(jnp.float32), (0, pad))
    bu = jnp.pad(bu.reshape(-1).astype(jnp.float32), (0, pad))

    n_blk = hp // th
    wgu = jnp.concatenate(
        [wg.reshape(d, n_blk, th), wu.reshape(d, n_blk, th)],
        axis=-1).reshape(d, 2 * hp)
    bgu = jnp.concatenate(
        [bg.reshape(n_blk, th), bu.reshape(n_blk, th)],
        axis=-1).reshape(1, 2 * hp)
    bd = bd.reshape(1, -1).astype(jnp.float32)
    return MLPParams(wgu=wgu, bgu=bgu, wd=wd, bd=bd, th=int(th), hidden=int(h))


def _weight_spec(shape, index_map, buffers):
    """BlockSpec for a streamed weight; optional deeper pipelining (v6e/v5e)."""
    if buffers and buffers > 2:
        try:
            return pl.BlockSpec(shape, index_map, pipeline_mode=pl.Buffered(buffers))
        except Exception:  # jax build without pipeline_mode support
            pass
    return pl.BlockSpec(shape, index_map)


# ---------------------------------------------------------------------------
# Forward pass using prepared weights (production path).
# ---------------------------------------------------------------------------
def qwen2_5_vl_mlp_prepared(x, params: MLPParams, *, tm: Optional[int] = None,
                            vmem_limit_bytes: Optional[int] = None,
                            weight_buffers: int = 2):
    """x: [..., in_features] -> [..., in_features]."""
    orig_shape = x.shape
    d = orig_shape[-1]
    out_dtype = x.dtype
    x2d = x.reshape(-1, d)
    if x2d.dtype != params.wgu.dtype:
        x2d = x2d.astype(params.wgu.dtype)     # small per-call cast (m*D only)
    m = x2d.shape[0]

    th = params.th
    hp = params.wd.shape[0]
    n_hidden_blk = hp // th

    cfg_tm, _, cfg_vmem, multi_core = _hw_config()
    tm = cfg_tm if tm is None else tm
    vmem_limit_bytes = cfg_vmem if vmem_limit_bytes is None else vmem_limit_bytes
    tm = min(tm, m)
    if multi_core and m >= 256 and m <= tm:
        # Ensure grid[0] >= 2 so the "parallel" token axis shards across both
        # TensorCores on v7x; otherwise one core sits idle.
        tm = _round_up((m + 1) // 2, 128)

    # Token-tail blocks (m % tm != 0): garbage rows in the padded x tile flow
    # through row-independent matmuls and are never stored back, so the
    # visible output is unaffected.
    grid = (pl.cdiv(m, tm), n_hidden_blk)

    w_item = jnp.dtype(params.wgu.dtype).itemsize
    cost = pl.CostEstimate(
        flops=int(6 * m * d * hp + 4 * m * hp),
        transcendentals=int(m * hp),
        bytes_accessed=int(
            m * d * jnp.dtype(x2d.dtype).itemsize            # x read
            + m * d * jnp.dtype(out_dtype).itemsize           # out write
            + grid[0] * (params.wgu.size + params.wd.size) * w_item),  # weight streams
    )

    kernel = functools.partial(_mlp_kernel, th=th)
    out = pl.pallas_call(
        kernel,
        out_shape=jax.ShapeDtypeStruct((m, d), out_dtype),
        grid_spec=pltpu.PrefetchScalarGridSpec(
            num_scalar_prefetch=0,
            grid=grid,
            in_specs=[
                pl.BlockSpec((tm, d), lambda i, hh: (i, 0)),                       # x (resident over hh)
                _weight_spec((d, 2 * th), lambda i, hh: (0, hh), weight_buffers),  # Wg|Wu fused
                pl.BlockSpec((1, 2 * th), lambda i, hh: (0, hh)),                  # bg|bu fused
                _weight_spec((th, d), lambda i, hh: (hh, 0), weight_buffers),      # Wd
                pl.BlockSpec((1, d), lambda i, hh: (0, 0)),                        # bd
            ],
            out_specs=pl.BlockSpec((tm, d), lambda i, hh: (i, 0)),
            scratch_shapes=[pltpu.VMEM((tm, d), jnp.float32)],
        ),
        compiler_params=pltpu.CompilerParams(
            dimension_semantics=("parallel", "arbitrary"),
            vmem_limit_bytes=vmem_limit_bytes),
        cost_estimate=cost,
    )(x2d, params.wgu, params.bgu, params.wd, params.bd)

    return out.reshape(orig_shape)


# ---------------------------------------------------------------------------
# Convenience wrapper (prepares weights per call — use only for testing).
# ---------------------------------------------------------------------------
def qwen2_5_vl_mlp(x, wg, bg, wu, bu, wd, bd, *, tm=None, th=None,
                   compute_dtype=jnp.bfloat16, vmem_limit_bytes=None,
                   weight_buffers=2):
    """For production, call prepare_mlp_params once and reuse the params."""
    params = prepare_mlp_params(wg, bg, wu, bu, wd, bd, th=th,
                                compute_dtype=compute_dtype)
    return qwen2_5_vl_mlp_prepared(x, params, tm=tm,
                                   vmem_limit_bytes=vmem_limit_bytes,
                                   weight_buffers=weight_buffers)


def _reference(x, wg, bg, wu, bu, wd, bd):
    gate = x @ wg + bg.reshape(1, -1)
    up = x @ wu + bu.reshape(1, -1)
    hidden = (gate * jax.nn.sigmoid(gate)) * up
    return hidden @ wd + bd.reshape(1, -1)


if __name__ == "__main__":
    # Small shapes consistent with the module's forward: x [seq, in_features].
    seq, in_features, hidden_features = 64, 128, 320
    dtype = jnp.float32

    key = jax.random.PRNGKey(0)
    kx, kg, kbg, ku, kbu, kd, kbd = jax.random.split(key, 7)

    x = jax.random.normal(kx, (seq, in_features), dtype=dtype)
    # Synthetic parameters (nn.Linear weight transposed to [in, out] layout).
    wg = jax.random.normal(kg, (in_features, hidden_features), dtype=dtype) * 0.05
    bg = jax.random.normal(kbg, (hidden_features,), dtype=dtype) * 0.05
    wu = jax.random.normal(ku, (in_features, hidden_features), dtype=dtype) * 0.05
    bu = jax.random.normal(kbu, (hidden_features,), dtype=dtype) * 0.05
    wd = jax.random.normal(kd, (hidden_features, in_features), dtype=dtype) * 0.05
    bd = jax.random.normal(kbd, (in_features,), dtype=dtype) * 0.05

    ref = np.asarray(_reference(x, wg, bg, wu, bu, wd, bd))

    # 1) Production path: prepare weights ONCE (default bf16 MXU compute,
    #    f32 accumulation), then call the kernel repeatedly.
    params = prepare_mlp_params(wg, bg, wu, bu, wd, bd)
    out = jax.block_until_ready(qwen2_5_vl_mlp_prepared(x, params))
    np.testing.assert_allclose(np.asarray(out), ref, rtol=3e-2, atol=3e-2)
    out = jax.block_until_ready(qwen2_5_vl_mlp_prepared(x, params))  # reuse params
    np.testing.assert_allclose(np.asarray(out), ref, rtol=3e-2, atol=3e-2)

    # 2) f32 fallback compute path, tight tolerance.
    out = jax.block_until_ready(
        qwen2_5_vl_mlp(x, wg, bg, wu, bu, wd, bd, compute_dtype=jnp.float32))
    np.testing.assert_allclose(np.asarray(out), ref, rtol=1e-4, atol=1e-4)

    # 3) Explicit small tiles: exercises the tiled token axis and the
    #    zero-padded hidden-reduction path (320 -> 384 with th=128).
    out = jax.block_until_ready(
        qwen2_5_vl_mlp(x, wg, bg, wu, bu, wd, bd, tm=32, th=128,
                       compute_dtype=jnp.float32))
    np.testing.assert_allclose(np.asarray(out), ref, rtol=1e-4, atol=1e-4)

    print("KERNEL_OK")
</pallas_src>

<mosaic_0001>
module attributes {stable_mosaic.version = 11 : i64} {
  func.func @_mlp_kernel(%arg0: i32, %arg1: i32, %arg2: memref<64x128xbf16, #tpu.memory_space<vmem>>, %arg3: memref<128x768xbf16, #tpu.memory_space<vmem>>, %arg4: memref<1x768xf32, #tpu.memory_space<vmem>>, %arg5: memref<384x128xbf16, #tpu.memory_space<vmem>>, %arg6: memref<1x128xf32, #tpu.memory_space<vmem>>, %arg7: memref<64x128xf32, #tpu.memory_space<vmem>>, %arg8: memref<64x128xf32, #tpu.memory_space<vmem>>) attributes {dimension_semantics = [#tpu.dimension_semantics<parallel>, #tpu.dimension_semantics<arbitrary>], iteration_bounds = array<i64: 1, 1>, scalar_prefetch = 0 : i64, scratch_operands = 1 : i64, tpu.core_type = #tpu.core_type<tc>, window_params = [{transform_indices = @transform_0, window_bounds = array<i64: 64, 128>}, {transform_indices = @transform_1, window_bounds = array<i64: 128, 768>}, {transform_indices = @transform_2, window_bounds = array<i64: 1, 768>}, {transform_indices = @transform_3, window_bounds = array<i64: 384, 128>}, {pipeline_mode = #tpu.pipeline_mode<synchronous>, transform_indices = @transform_4, window_bounds = array<i64: 1, 128>}, {transform_indices = @transform_5, window_bounds = array<i64: 64, 128>}]} {
    %c0_i32 = arith.constant 0 : i32
    %0 = arith.cmpi eq, %arg1, %c0_i32 : i32
    %1 = arith.extui %0 : i1 to i32
    %c0_i32_0 = arith.constant 0 : i32
    %2 = arith.cmpi ne, %1, %c0_i32_0 : i32
    scf.if %2 {
      %cst_16 = arith.constant 0.000000e+00 : f32
      %27 = vector.broadcast %cst_16 : f32 to vector<64x128xf32>
      %c0_17 = arith.constant 0 : index
      %c0_18 = arith.constant 0 : index
      %28 = vector.load %arg8[%c0_17, %c0_18] : memref<64x128xf32, #tpu.memory_space<vmem>>, vector<64x128xf32>
      tpu.vector_store %arg8[%c0_17, %c0_18], %27 {strides = array<i32>} : memref<64x128xf32, #tpu.memory_space<vmem>>, vector<64x128xf32>,
    } else {
    }
    %c0 = arith.constant 0 : index
    %c0_1 = arith.constant 0 : index
    %3 = vector.load %arg2[%c0, %c0_1] : memref<64x128xbf16, #tpu.memory_space<vmem>>, vector<64x128xbf16>
    %c0_2 = arith.constant 0 : index
    %c0_3 = arith.constant 0 : index
    %4 = vector.load %arg3[%c0_2, %c0_3] : memref<128x768xbf16, #tpu.memory_space<vmem>>, vector<128x768xbf16>
    %cst = arith.constant dense<0.000000e+00> : vector<64x768xf32>
    %5 = tpu.matmul %3, %4, %cst {dimension_numbers = #tpu.dot_dimension_numbers<[1], [0], [0], [1], [0, 0, 1, 1], [], []>} : vector<64x128xbf16>, vector<128x768xbf16>, vector<64x768xf32> -> vector<64x768xf32>
    %c0_4 = arith.constant 0 : index
    %c0_5 = arith.constant 0 : index
    %6 = vector.load %arg4[%c0_4, %c0_5] : memref<1x768xf32, #tpu.memory_space<vmem>>, vector<1x768xf32>
    %7 = vector.broadcast %6 : vector<1x768xf32> to vector<64x768xf32>
    %8 = arith.addf %5, %7 : vector<64x768xf32>
    %9 = vector.extract_strided_slice %8 {offsets = [0, 0], sizes = [64, 384], strides = [1, 1]} : vector<64x768xf32> to vector<64x384xf32>
    %10 = vector.extract_strided_slice %8 {offsets = [0, 384], sizes = [64, 384], strides = [1, 1]} : vector<64x768xf32> to vector<64x384xf32>
    %11 = arith.negf %9 : vector<64x384xf32>
    %12 = math.exp %11 : vector<64x384xf32>
    %cst_6 = arith.constant 1.000000e+00 : f32
    %13 = vector.broadcast %cst_6 : f32 to vector<64x384xf32>
    %14 = arith.addf %13, %12 : vector<64x384xf32>
    %15 = arith.divf %13, %14 : vector<64x384xf32>
    %16 = arith.mulf %9, %15 : vector<64x384xf32>
    %17 = arith.mulf %16, %10 : vector<64x384xf32>
    %c0_7 = arith.constant 0 : index
    %c0_8 = arith.constant 0 : index
    %18 = vector.load %arg8[%c0_7, %c0_8] : memref<64x128xf32, #tpu.memory_space<vmem>>, vector<64x128xf32>
    %19 = arith.truncf %17 : vector<64x384xf32> to vector<64x384xbf16>
    %c0_9 = arith.constant 0 : index
    %c0_10 = arith.constant 0 : index
    %20 = vector.load %arg5[%c0_9, %c0_10] : memref<384x128xbf16, #tpu.memory_space<vmem>>, vector<384x128xbf16>
    %cst_11 = arith.constant dense<0.000000e+00> : vector<64x128xf32>
    %21 = tpu.matmul %19, %20, %cst_11 {dimension_numbers = #tpu.dot_dimension_numbers<[1], [0], [0], [1], [0, 0, 1, 1], [], []>} : vector<64x384xbf16>, vector<384x128xbf16>, vector<64x128xf32> -> vector<64x128xf32>
    %22 = arith.addf %18, %21 : vector<64x128xf32>
    %c0_12 = arith.constant 0 : index
    %c0_13 = arith.constant 0 : index
    %23 = vector.load %arg8[%c0_12, %c0_13] : memref<64x128xf32, #tpu.memory_space<vmem>>, vector<64x128xf32>
    tpu.vector_store %arg8[%c0_12, %c0_13], %22 {strides = array<i32>} : memref<64x128xf32, #tpu.memory_space<vmem>>, vector<64x128xf32>,
    %c0_i32_14 = arith.constant 0 : i32
    %24 = arith.cmpi eq, %arg1, %c0_i32_14 : i32
    %25 = arith.extui %24 : i1 to i32
    %c0_i32_15 = arith.constant 0 : i32
    %26 = arith.cmpi ne, %25, %c0_i32_15 : i32
    scf.if %26 {
      %c0_16 = arith.constant 0 : index
      %c0_17 = arith.constant 0 : index
      %27 = vector.load %arg8[%c0_16, %c0_17] : memref<64x128xf32, #tpu.memory_space<vmem>>, vector<64x128xf32>
      %c0_18 = arith.constant 0 : index
      %c0_19 = arith.constant 0 : index
      %28 = vector.load %arg6[%c0_18, %c0_19] : memref<1x128xf32, #tpu.memory_space<vmem>>, vector<1x128xf32>
      %29 = vector.broadcast %28 : vector<1x128xf32> to vector<64x128xf32>
      %30 = arith.addf %27, %29 : vector<64x128xf32>
      %c0_20 = arith.constant 0 : index
      %c0_21 = arith.constant 0 : index
      %31 = vector.load %arg7[%c0_20, %c0_21] : memref<64x128xf32, #tpu.memory_space<vmem>>, vector<64x128xf32>
      tpu.vector_store %arg7[%c0_20, %c0_21], %30 {strides = array<i32>} : memref<64x128xf32, #tpu.memory_space<vmem>>, vector<64x128xf32>,
    } else {
    }
    return
  }
  func.func @transform_0(%arg0: i32, %arg1: i32) -> (i32, i32) {
    %c0_i32 = arith.constant 0 : i32
    %c0_i32_0 = arith.constant 0 : i32
    return %arg0, %c0_i32 : i32, i32
  }
  func.func @transform_1(%arg0: i32, %arg1: i32) -> (i32, i32) {
    %c0_i32 = arith.constant 0 : i32
    %c0_i32_0 = arith.constant 0 : i32
    return %c0_i32, %arg1 : i32, i32
  }
  func.func @transform_2(%arg0: i32, %arg1: i32) -> (i32, i32) {
    %c0_i32 = arith.constant 0 : i32
    %c0_i32_0 = arith.constant 0 : i32
    return %c0_i32, %arg1 : i32, i32
  }
  func.func @transform_3(%arg0: i32, %arg1: i32) -> (i32, i32) {
    %c0_i32 = arith.constant 0 : i32
    %c0_i32_0 = arith.constant 0 : i32
    return %arg1, %c0_i32 : i32, i32
  }
  func.func @transform_4(%arg0: i32, %arg1: i32) -> (i32, i32) {
    %c0_i32 = arith.constant 0 : i32
    %c0_i32_0 = arith.constant 0 : i32
    %c0_i32_1 = arith.constant 0 : i32
    return %c0_i32, %c0_i32_0 : i32, i32
  }
  func.func @transform_5(%arg0: i32, %arg1: i32) -> (i32, i32) {
    %c0_i32 = arith.constant 0 : i32
    %c0_i32_0 = arith.constant 0 : i32
    return %arg0, %c0_i32 : i32, i32
  }
}

</mosaic_0001>

<llo_original>
// kernel: tpu_custom_call.1
$region0: #{tpu_custom_call.1}
  #allocation0 [shape = 'u32[]', space=smem, size = 0x4, offset = 0x4, fixed_abs, tag = 'smem constant byte address 0x4 - core index']
  #allocation1 [shape = 'u32[144,128]{1,0:T(1,128)}', space=vmem, size = 0x12000, scoped, tag = 'internal scratch']
  #allocation2 [shape = 'f32[64,128]{1,0:T(8,128)}', space=vmem, size = 0x8000, scoped, tag = 'scratch operand']
  %s0 = inlined_call_operand.hbm [shape: bf16[64,128], index: 0, kind: input, shape index: {}]
  %s1 = inlined_call_operand.hbm [shape: bf16[128,768], index: 1, kind: input, shape index: {}]
  %s2 = inlined_call_operand.vmem [shape: f32[1,768], index: 2, kind: input, shape index: {}]
  %s3 = inlined_call_operand.hbm [shape: bf16[384,128], index: 3, kind: input, shape index: {}]
  %s4 = inlined_call_operand.vmem [shape: f32[1,128], index: 4, kind: input, shape index: {}]
  %s5 = inlined_call_operand.hbm [shape: f32[64,128], index: 5, kind: output, shape index: {}]
  %s6 = sld [smem:[#allocation0]]
  $region50: #{tpu_custom_call.1} parent=0
    _
  %s8 = ssub.s32 1, %s6
  %s9 = scalar_select 0, %s8, %s6
  $region1: #{tpu_custom_call.1} parent=0
    #allocation3 [shape = 'u8[16384]{0}', space=vmem, size = 0x4000, scoped, tag = 'input window, operand 0, single buffered']
    #allocation4 [shape = 's32[1]{0}', space=sflag, size = 0x4, scoped, tag = 'scoped memory for tpu_custom_call.1']
    #allocation5 [shape = 's32[1]{0}', space=sflag, size = 0x4, scoped, tag = 'scoped memory for tpu_custom_call.1']
    #allocation6 [shape = 'u8[196608]{0}', space=vmem, size = 0x30000, scoped, tag = 'input window, operand 1, single buffered']
    #allocation7 [shape = 's32[1]{0}', space=sflag, size = 0x4, scoped, tag = 'scoped memory for tpu_custom_call.1']
    #allocation8 [shape = 'u8[98304]{0}', space=vmem, size = 0x18000, scoped, tag = 'input window, operand 3, single buffered']
    #allocation9 [shape = 'u8[32768]{0}', space=vmem, size = 0x8000, scoped, tag = 'output window, operand 0, single buffered']
    %10 = vsyncpa [#allocation4], 0
    %11 = vsyncpa [#allocation7], 0
    %12 = vsyncpa [#allocation5], 0
    // Predicated region
    $region2: #{tpu_custom_call.1} parent=1 // pred_check
      _
    $region3: #{tpu_custom_call.1} parent=1 // pred_check_branch
      %14 = sbr.rel (0) target = $region5
    $region4: #{tpu_custom_call.1} parent=1 // pred_region
      %s16 = ssub.s32 512, 512
      %17 = vsyncadd [#allocation4], %s16
      %s18 = sshll.u32 [#allocation3], 4
      %s19 = int_to_ptr.vmem [resolvable:$true] %s18
      %24 = dma.hbm_to_vmem [thread:$0]  %s0, 512, %s19, [#allocation4], 64, 64, 4
    $region5: #{tpu_custom_call.1} parent=1 // pred_fallthru
      _
    // Predicated region
    $region6: #{tpu_custom_call.1} parent=1 // pred_check
      _
    $region7: #{tpu_custom_call.1} parent=1 // pred_check_branch
      %26 = sbr.rel (0) target = $region9
    $region8: #{tpu_custom_call.1} parent=1 // pred_region
      %s28 = ssub.s32 6144, 6144
      %29 = vsyncadd [#allocation7], %s28
      %s30 = sshll.u32 [#allocation6], 4
      %s31 = int_to_ptr.vmem [resolvable:$true] %s30
      %36 = dma.hbm_to_vmem [thread:$0]  %s1, 6144, %s31, [#allocation7], 384, 384, 24
    $region9: #{tpu_custom_call.1} parent=1 // pred_fallthru
      _
    // Predicated region
    $region10: #{tpu_custom_call.1} parent=1 // pred_check
      _
    $region11: #{tpu_custom_call.1} parent=1 // pred_check_branch
      %38 = sbr.rel (0) target = $region13
    $region12: #{tpu_custom_call.1} parent=1 // pred_region
      _
    $region13: #{tpu_custom_call.1} parent=1 // pred_fallthru
      _
    // Predicated region
    $region14: #{tpu_custom_call.1} parent=1 // pred_check
      _
    $region15: #{tpu_custom_call.1} parent=1 // pred_check_branch
      %40 = sbr.rel (0) target = $region17
    $region16: #{tpu_custom_call.1} parent=1 // pred_region
      %s42 = ssub.s32 3072, 3072
      %43 = vsyncadd [#allocation7], %s42
      %s44 = sshll.u32 [#allocation8], 4
      %s45 = int_to_ptr.vmem [resolvable:$true] %s44
      %50 = dma.hbm_to_vmem [thread:$0]  %s3, 3072, %s45, [#allocation7], 64, 64, 4
    $region17: #{tpu_custom_call.1} parent=1 // pred_fallthru
      _
    // Predicated region
    $region18: #{tpu_custom_call.1} parent=1 // pred_check
      _
    $region19: #{tpu_custom_call.1} parent=1 // pred_check_branch
      %52 = sbr.rel (0) target = $region21
    $region20: #{tpu_custom_call.1} parent=1 // pred_region
      _
    $region21: #{tpu_custom_call.1} parent=1 // pred_fallthru
      _
    // Predicated region
    $region22: #{tpu_custom_call.1} parent=1 // pred_check
      _
    $region23: #{tpu_custom_call.1} parent=1 // pred_check_branch
      %54 = sbr.rel (0) target = $region25
    $region24: #{tpu_custom_call.1} parent=1 // pred_region
      %55 = dma.done [#allocation4], 512
    $region25: #{tpu_custom_call.1} parent=1 // pred_fallthru
      _
    // Predicated region
    $region26: #{tpu_custom_call.1} parent=1 // pred_check
      _
    $region27: #{tpu_custom_call.1} parent=1 // pred_check_branch
      %57 = sbr.rel (0) target = $region29
    $region28: #{tpu_custom_call.1} parent=1 // pred_region
      %58 = dma.done [#allocation7], 6144
    $region29: #{tpu_custom_call.1} parent=1 // pred_fallthru
      _
    // Predicated region
    $region30: #{tpu_custom_call.1} parent=1 // pred_check
      _
    $region31: #{tpu_custom_call.1} parent=1 // pred_check_branch
      %60 = sbr.rel (0) target = $region33
    $region32: #{tpu_custom_call.1} parent=1 // pred_region
      %61 = dma.done [#allocation7], 3072
    $region33: #{tpu_custom_call.1} parent=1 // pred_fallthru
      _
    %p63 = scmp.eq.s32.totalorder 0, 0
    // Predicated region
    $region34: #{tpu_custom_call.1} parent=1 // pred_check
      %p64 = pneg %p63
    $region35: #{tpu_custom_call.1} parent=1 // pred_check_branch
      %66 = sbr.rel (%p64) target = $region37
    $region36: #{tpu_custom_call.1} parent=1 // pred_region
      %67 = vst [vmem:[#allocation2] sm:$0xff] 0.0
      %68 = vst [vmem:[#allocation2 + $0x8] sm:$0xff] 0.0
      %69 = vst [vmem:[#allocation2 + $0x10] sm:$0xff] 0.0
      %70 = vst [vmem:[#allocation2 + $0x18] sm:$0xff] 0.0
      %71 = vst [vmem:[#allocation2 + $0x20] sm:$0xff] 0.0
      %72 = vst [vmem:[#allocation2 + $0x28] sm:$0xff] 0.0
      %73 = vst [vmem:[#allocation2 + $0x30] sm:$0xff] 0.0
      %74 = vst [vmem:[#allocation2 + $0x38] sm:$0xff] 0.0
    $region37: #{tpu_custom_call.1} parent=1 // pred_fallthru
      _
    %v75 = vld [vmem:[#allocation3] sm:$0xf]
    %v76 = vld [vmem:[#allocation3 + $0x4] sm:$0xf]
    %v77 = vld [vmem:[#allocation3 + $0x8] sm:$0xf]
    %v78 = vld [vmem:[#allocation3 + $0xc] sm:$0xf]
    %v79 = vld [vmem:[#allocation3 + $0x10] sm:$0xf]
    %v80 = vld [vmem:[#allocation3 + $0x14] sm:$0xf]
    %v81 = vld [vmem:[#allocation3 + $0x18] sm:$0xf]
    %v82 = vld [vmem:[#allocation3 + $0x1c] sm:$0xf]
    %v83 = vld [vmem:[#allocation6] sm:$0xff]
    %v84 = vld [vmem:[#allocation6 + $0x8] sm:$0xff]
    %v85 = vld [vmem:[#allocation6 + $0x10] sm:$0xff]
    %v86 = vld [vmem:[#allocation6 + $0x18] sm:$0xff]
    %v87 = vld [vmem:[#allocation6 + $0x20] sm:$0xff]
    %v88 = vld [vmem:[#allocation6 + $0x28] sm:$0xff]
    %v89 = vld [vmem:[#allocation6 + $0x30] sm:$0xff]
    %v90 = vld [vmem:[#allocation6 + $0x38] sm:$0xff]
    %v91 = vld [vmem:[#allocation6 + $0x40] sm:$0xff]
    %v92 = vld [vmem:[#allocation6 + $0x48] sm:$0xff]
    %v93 = vld [vmem:[#allocation6 + $0x50] sm:$0xff]
    %v94 = vld [vmem:[#allocation6 + $0x58] sm:$0xff]
    %v95 = vld [vmem:[#allocation6 + $0x60] sm:$0xff]
    %v96 = vld [vmem:[#allocation6 + $0x68] sm:$0xff]
    %v97 = vld [vmem:[#allocation6 + $0x70] sm:$0xff]
    %v98 = vld [vmem:[#allocation6 + $0x78] sm:$0xff]
    %v99 = vld [vmem:[#allocation6 + $0x80] sm:$0xff]
    %v100 = vld [vmem:[#allocation6 + $0x88] sm:$0xff]
    %v101 = vld [vmem:[#allocation6 + $0x90] sm:$0xff]
    %v102 = vld [vmem:[#allocation6 + $0x98] sm:$0xff]
    %v103 = vld [vmem:[#allocation6 + $0xa0] sm:$0xff]
    %v104 = vld [vmem:[#allocation6 + $0xa8] sm:$0xff]
    %v105 = vld [vmem:[#allocation6 + $0xb0] sm:$0xff]
    %v106 = vld [vmem:[#allocation6 + $0xb8] sm:$0xff]
    %v107 = vld [vmem:[#allocation6 + $0xc0] sm:$0xff]
    %v108 = vld [vmem:[#allocation6 + $0xc8] sm:$0xff]
    %v109 = vld [vmem:[#allocation6 + $0xd0] sm:$0xff]
    %v110 = vld [vmem:[#allocation6 + $0xd8] sm:$0xff]
    %v111 = vld [vmem:[#allocation6 + $0xe0] sm:$0xff]
    %v112 = vld [vmem:[#allocation6 + $0xe8] sm:$0xff]
    %v113 = vld [vmem:[#allocation6 + $0xf0] sm:$0xff]
    %v114 = vld [vmem:[#allocation6 + $0xf8] sm:$0xff]
    %v115 = vld [vmem:[#allocation6 + $0x100] sm:$0xff]
    %v116 = vld [vmem:[#allocation6 + $0x108] sm:$0xff]
    %v117 = vld [vmem:[#allocation6 + $0x110] sm:$0xff]
    %v118 = vld [vmem:[#allocation6 + $0x118] sm:$0xff]
    %v119 = vld [vmem:[#allocation6 + $0x120] sm:$0xff]
    %v120 = vld [vmem:[#allocation6 + $0x128] sm:$0xff]
    %v121 = vld [vmem:[#allocation6 + $0x130] sm:$0xff]
    %v122 = vld [vmem:[#allocation6 + $0x138] sm:$0xff]
    %v123 = vld [vmem:[#allocation6 + $0x140] sm:$0xff]
    %v124 = vld [vmem:[#allocation6 + $0x148] sm:$0xff]
    %v125 = vld [vmem:[#allocation6 + $0x150] sm:$0xff]
    %v126 = vld [vmem:[#allocation6 + $0x158] sm:$0xff]
    %v127 = vld [vmem:[#allocation6 + $0x160] sm:$0xff]
    %v128 = vld [vmem:[#allocation6 + $0x168] sm:$0xff]
    %v129 = vld [vmem:[#allocation6 + $0x170] sm:$0xff]
    %v130 = vld [vmem:[#allocation6 + $0x178] sm:$0xff]
    %v131 = vld [vmem:[%s2] sm:$0x3f]
    %v133 = vlaneseq
    %v134 = vshrl.u32 %v133, 7
    %v135 = vsub.s32 0, %v134
    %v136 = vrot.slane %v131, %v135
    %v137 = vlaneseq
    %v138 = vshrl.u32 %v137, 7
    %v139 = vsub.s32 1, %v138
    %v140 = vrot.slane %v131, %v139
    %v141 = vlaneseq
    %v142 = vshrl.u32 %v141, 7
    %v143 = vsub.s32 2, %v142
    %v144 = vrot.slane %v131, %v143
    %v145 = vlaneseq
    %v146 = vshrl.u32 %v145, 7
    %v147 = vsub.s32 3, %v146
    %v148 = vrot.slane %v131, %v147
    %v149 = vlaneseq
    %v150 = vshrl.u32 %v149, 7
    %v151 = vsub.s32 4, %v150
    %v152 = vrot.slane %v131, %v151
    %v153 = vlaneseq
    %v154 = vshrl.u32 %v153, 7
    %v155 = vsub.s32 5, %v154
    %v156 = vrot.slane %v131, %v155
    %v171 = vunpack.c.l.b16 %v75
    %v172 = vunpack.c.l.b16 %v76
    %v173 = vunpack.c.l.b16 %v77
    %v174 = vunpack.c.l.b16 %v78
    %v175 = vunpack.c.l.b16 %v79
    %v176 = vunpack.c.l.b16 %v80
    %v177 = vunpack.c.l.b16 %v81
    %v178 = vunpack.c.l.b16 %v82
    %v179 = vpack.c.b16 %v172, %v171
    %v180 = vpack.c.b16 %v174, %v173
    %v181 = vpack.c.b16 %v176, %v175
    %v182 = vpack.c.b16 %v178, %v177
    %v235 = vunpack.c.l.b16 %v83
    %v236 = vunpack.c.h.b16 %v83
    %v237 = vunpack.c.l.b16 %v84
    %v238 = vunpack.c.h.b16 %v84
    %v239 = vunpack.c.l.b16 %v85
    %v240 = vunpack.c.h.b16 %v85
    %v241 = vunpack.c.l.b16 %v86
    %v242 = vunpack.c.h.b16 %v86
    %v243 = vunpack.c.l.b16 %v87
    %v244 = vunpack.c.h.b16 %v87
    %v245 = vunpack.c.l.b16 %v88
    %v246 = vunpack.c.h.b16 %v88
    %v247 = vunpack.c.l.b16 %v89
    %v248 = vunpack.c.h.b16 %v89
    %v249 = vunpack.c.l.b16 %v90
    %v250 = vunpack.c.h.b16 %v90
    %v251 = vunpack.c.l.b16 %v91
    %v252 = vunpack.c.h.b16 %v91
    %v253 = vunpack.c.l.b16 %v92
    %v254 = vunpack.c.h.b16 %v92
    %v255 = vunpack.c.l.b16 %v93
    %v256 = vunpack.c.h.b16 %v93
    %v257 = vunpack.c.l.b16 %v94
    %v258 = vunpack.c.h.b16 %v94
    %v259 = vunpack.c.l.b16 %v95
    %v260 = vunpack.c.h.b16 %v95
    %v261 = vunpack.c.l.b16 %v96
    %v262 = vunpack.c.h.b16 %v96
    %v263 = vunpack.c.l.b16 %v97
    %v264 = vunpack.c.h.b16 %v97
    %v265 = vunpack.c.l.b16 %v98
    %v266 = vunpack.c.h.b16 %v98
    %v267 = vunpack.c.l.b16 %v99
    %v268 = vunpack.c.h.b16 %v99
    %v269 = vunpack.c.l.b16 %v100
    %v270 = vunpack.c.h.b16 %v100
    %v271 = vunpack.c.l.b16 %v101
    %v272 = vunpack.c.h.b16 %v101
    %v273 = vunpack.c.l.b16 %v102
    %v274 = vunpack.c.h.b16 %v102
    %v275 = vunpack.c.l.b16 %v103
    %v276 = vunpack.c.h.b16 %v103
    %v277 = vunpack.c.l.b16 %v104
    %v278 = vunpack.c.h.b16 %v104
    %v279 = vunpack.c.l.b16 %v105
    %v280 = vunpack.c.h.b16 %v105
    %v281 = vunpack.c.l.b16 %v106
    %v282 = vunpack.c.h.b16 %v106
    %v283 = vunpack.c.l.b16 %v107
    %v284 = vunpack.c.h.b16 %v107
    %v285 = vunpack.c.l.b16 %v108
    %v286 = vunpack.c.h.b16 %v108
    %v287 = vunpack.c.l.b16 %v109
    %v288 = vunpack.c.h.b16 %v109
    %v289 = vunpack.c.l.b16 %v110
    %v290 = vunpack.c.h.b16 %v110
    %v291 = vunpack.c.l.b16 %v111
    %v292 = vunpack.c.h.b16 %v111
    %v293 = vunpack.c.l.b16 %v112
    %v294 = vunpack.c.h.b16 %v112
    %v295 = vunpack.c.l.b16 %v113
    %v296 = vunpack.c.h.b16 %v113
    %v297 = vunpack.c.l.b16 %v114
    %v298 = vunpack.c.h.b16 %v114
    %v299 = vunpack.c.l.b16 %v115
    %v300 = vunpack.c.h.b16 %v115
    %v301 = vunpack.c.l.b16 %v116
    %v302 = vunpack.c.h.b16 %v116
    %v303 = vunpack.c.l.b16 %v117
    %v304 = vunpack.c.h.b16 %v117
    %v305 = vunpack.c.l.b16 %v118
    %v306 = vunpack.c.h.b16 %v118
    %v307 = vunpack.c.l.b16 %v119
    %v308 = vunpack.c.h.b16 %v119
    %v309 = vunpack.c.l.b16 %v120
    %v310 = vunpack.c.h.b16 %v120
    %v311 = vunpack.c.l.b16 %v121
    %v312 = vunpack.c.h.b16 %v121
    %v313 = vunpack.c.l.b16 %v122
    %v314 = vunpack.c.h.b16 %v122
    %v315 = vunpack.c.l.b16 %v123
    %v316 = vunpack.c.h.b16 %v123
    %v317 = vunpack.c.l.b16 %v124
    %v318 = vunpack.c.h.b16 %v124
    %v319 = vunpack.c.l.b16 %v125
    %v320 = vunpack.c.h.b16 %v125
    %v321 = vunpack.c.l.b16 %v126
    %v322 = vunpack.c.h.b16 %v126
    %v323 = vunpack.c.l.b16 %v127
    %v324 = vunpack.c.h.b16 %v127
    %v325 = vunpack.c.l.b16 %v128
    %v326 = vunpack.c.h.b16 %v128
    %v327 = vunpack.c.l.b16 %v129
    %v328 = vunpack.c.h.b16 %v129
    %v329 = vunpack.c.l.b16 %v130
    %v330 = vunpack.c.h.b16 %v130
    %v331 = vpack.c.b16 %v241, %v235
    %v332 = vpack.c.b16 %v242, %v236
    %v333 = vpack.c.b16 %v243, %v237
    %v334 = vpack.c.b16 %v244, %v238
    %v335 = vpack.c.b16 %v245, %v239
    %v336 = vpack.c.b16 %v246, %v240
    %v337 = vpack.c.b16 %v253, %v247
    %v338 = vpack.c.b16 %v254, %v248
    %v339 = vpack.c.b16 %v255, %v249
    %v340 = vpack.c.b16 %v256, %v250
    %v341 = vpack.c.b16 %v257, %v251
    %v342 = vpack.c.b16 %v258, %v252
    %v343 = vpack.c.b16 %v265, %v259
    %v344 = vpack.c.b16 %v266, %v260
    %v345 = vpack.c.b16 %v267, %v261
    %v346 = vpack.c.b16 %v268, %v262
    %v347 = vpack.c.b16 %v269, %v263
    %v348 = vpack.c.b16 %v270, %v264
    %v349 = vpack.c.b16 %v277, %v271
    %v350 = vpack.c.b16 %v278, %v272
    %v351 = vpack.c.b16 %v279, %v273
    %v352 = vpack.c.b16 %v280, %v274
    %v353 = vpack.c.b16 %v281, %v275
    %v354 = vpack.c.b16 %v282, %v276
    %v355 = vpack.c.b16 %v289, %v283
    %v356 = vpack.c.b16 %v290, %v284
    %v357 = vpack.c.b16 %v291, %v285
    %v358 = vpack.c.b16 %v292, %v286
    %v359 = vpack.c.b16 %v293, %v287
    %v360 = vpack.c.b16 %v294, %v288
    %v361 = vpack.c.b16 %v301, %v295
    %v362 = vpack.c.b16 %v302, %v296
    %v363 = vpack.c.b16 %v303, %v297
    %v364 = vpack.c.b16 %v304, %v298
    %v365 = vpack.c.b16 %v305, %v299
    %v366 = vpack.c.b16 %v306, %v300
    %v367 = vpack.c.b16 %v313, %v307
    %v368 = vpack.c.b16 %v314, %v308
    %v369 = vpack.c.b16 %v315, %v309
    %v370 = vpack.c.b16 %v316, %v310
    %v371 = vpack.c.b16 %v317, %v311
    %v372 = vpack.c.b16 %v318, %v312
    %v373 = vpack.c.b16 %v325, %v319
    %v374 = vpack.c.b16 %v326, %v320
    %v375 = vpack.c.b16 %v327, %v321
    %v376 = vpack.c.b16 %v328, %v322
    %v377 = vpack.c.b16 %v329, %v323
    %v378 = vpack.c.b16 %v330, %v324
    %427 = vmatprep.subr.bf16.mxu0 %v332
    %428 = vmatpush1.bf16.msra.mxu0 %v331
    %429 = vmatprep.subr.bf16.mxu0 %v338
    %430 = vmatpush1.bf16.msra.mxu0 %v337
    %431 = vmatprep.subr.bf16.mxu0 %v344
    %432 = vmatpush1.bf16.msra.mxu0 %v343
    %433 = vmatprep.subr.bf16.mxu0 %v350
    %434 = vmatpush1.bf16.msra.mxu0 %v349
    %435 = vmatprep.subr.bf16.mxu0 %v356
    %436 = vmatpush1.bf16.msra.mxu0 %v355
    %437 = vmatprep.subr.bf16.mxu0 %v362
    %438 = vmatpush1.bf16.msra.mxu0 %v361
    %439 = vmatprep.subr.bf16.mxu0 %v368
    %440 = vmatpush1.bf16.msra.mxu0 %v367
    %441 = vmatprep.subr.bf16.mxu0 %v374
    %442 = vmatpush1.bf16.msra.mxu0 %v373
    %443 = vmatprep.subr.bf16.mxu0 0
    %444 = vmatpush1.bf16.msra.mxu0 0
    %445 = vmatprep.subr.bf16.mxu0 0
    %446 = vmatpush1.bf16.msra.mxu0 0
    %447 = vmatprep.subr.bf16.mxu0 0
    %448 = vmatpush1.bf16.msra.mxu0 0
    %449 = vmatprep.subr.bf16.mxu0 0
    %450 = vmatpush1.bf16.msra.mxu0 0
    %451 = vmatprep.subr.bf16.mxu0 0
    %452 = vmatpush1.bf16.msra.mxu0 0
    %453 = vmatprep.subr.bf16.mxu0 0
    %454 = vmatpush1.bf16.msra.mxu0 0
    %455 = vmatprep.subr.bf16.mxu0 0
    %456 = vmatpush1.bf16.msra.mxu0 0
    %457 = vmatprep.subr.bf16.mxu0 0
    %458 = vmatpush1.bf16.msra.mxu0 0
    %459 = vmatprep.mubr.bf16.mxu0 0
    %460 = vmatmul.mubr.bf16.gmra.mrb[0].mxu0 %v179
    %v461 = vpop.f32.mrb[0].mxu0
    %v462 = vadd.f32 %v136, %v461
    %v463 = vpop.f32.mrb[0].mxu0
    %v464 = vadd.f32 %v140, %v463
    %v465 = vpop.f32.mrb[0].mxu0
    %v466 = vadd.f32 %v136, %v465
    %v467 = vpop.f32.mrb[0].mxu0
    %v468 = vadd.f32 %v140, %v467
    %469 = vmatprep.mubr.bf16.mxu0 0
    %470 = vmatmul.mubr.bf16.gmra.mrb[0].mxu0 %v180
    %v471 = vpop.f32.mrb[0].mxu0
    %v472 = vadd.f32 %v136, %v471
    %v473 = vpop.f32.mrb[0].mxu0
    %v474 = vadd.f32 %v140, %v473
    %v475 = vpop.f32.mrb[0].mxu0
    %v476 = vadd.f32 %v136, %v475
    %v477 = vpop.f32.mrb[0].mxu0
    %v478 = vadd.f32 %v140, %v477
    %479 = vmatprep.mubr.bf16.mxu0 0
    %480 = vmatmul.mubr.bf16.gmra.mrb[0].mxu0 %v181
    %v481 = vpop.f32.mrb[0].mxu0
    %v482 = vadd.f32 %v136, %v481
    %v483 = vpop.f32.mrb[0].mxu0
    %v484 = vadd.f32 %v140, %v483
    %v485 = vpop.f32.mrb[0].mxu0
    %v486 = vadd.f32 %v136, %v485
    %v487 = vpop.f32.mrb[0].mxu0
    %v488 = vadd.f32 %v140, %v487
    %489 = vmatprep.mubr.bf16.mxu0 0
    %490 = vmatmul.mubr.bf16.gmra.mrb[0].mxu0 %v182
    %v491 = vpop.f32.mrb[0].mxu0
    %v492 = vadd.f32 %v136, %v491
    %v493 = vpop.f32.mrb[0].mxu0
    %v494 = vadd.f32 %v140, %v493
    %v495 = vpop.f32.mrb[0].mxu0
    %v496 = vadd.f32 %v136, %v495
    %v497 = vpop.f32.mrb[0].mxu0
    %v498 = vadd.f32 %v140, %v497
    %499 = vdwg.mxu0
    %500 = vmatprep.subr.bf16.mxu0 %v334
    %501 = vmatpush1.bf16.msra.mxu0 %v333
    %502 = vmatprep.subr.bf16.mxu0 %v340
    %503 = vmatpush1.bf16.msra.mxu0 %v339
    %504 = vmatprep.subr.bf16.mxu0 %v346
    %505 = vmatpush1.bf16.msra.mxu0 %v345
    %506 = vmatprep.subr.bf16.mxu0 %v352
    %507 = vmatpush1.bf16.msra.mxu0 %v351
    %508 = vmatprep.subr.bf16.mxu0 %v358
    %509 = vmatpush1.bf16.msra.mxu0 %v357
    %510 = vmatprep.subr.bf16.mxu0 %v364
    %511 = vmatpush1.bf16.msra.mxu0 %v363
    %512 = vmatprep.subr.bf16.mxu0 %v370
    %513 = vmatpush1.bf16.msra.mxu0 %v369
    %514 = vmatprep.subr.bf16.mxu0 %v376
    %515 = vmatpush1.bf16.msra.mxu0 %v375
    %516 = vmatprep.subr.bf16.mxu0 0
    %517 = vmatpush1.bf16.msra.mxu0 0
    %518 = vmatprep.subr.bf16.mxu0 0
    %519 = vmatpush1.bf16.msra.mxu0 0
    %520 = vmatprep.subr.bf16.mxu0 0
    %521 = vmatpush1.bf16.msra.mxu0 0
    %522 = vmatprep.subr.bf16.mxu0 0
    %523 = vmatpush1.bf16.msra.mxu0 0
    %524 = vmatprep.subr.bf16.mxu0 0
    %525 = vmatpush1.bf16.msra.mxu0 0
    %526 = vmatprep.subr.bf16.mxu0 0
    %527 = vmatpush1.bf16.msra.mxu0 0
    %528 = vmatprep.subr.bf16.mxu0 0
    %529 = vmatpush1.bf16.msra.mxu0 0
    %530 = vmatprep.subr.bf16.mxu0 0
    %531 = vmatpush1.bf16.msra.mxu0 0
    %532 = vmatprep.mubr.bf16.mxu0 0
    %533 = vmatmul.mubr.bf16.gmra.mrb[0].mxu0 %v179
    %v534 = vpop.f32.mrb[0].mxu0
    %v535 = vadd.f32 %v144, %v534
    %v536 = vpop.f32.mrb[0].mxu0
    %v537 = vadd.f32 %v148, %v536
    %v538 = vpop.f32.mrb[0].mxu0
    %v539 = vadd.f32 %v144, %v538
    %v540 = vpop.f32.mrb[0].mxu0
    %v541 = vadd.f32 %v148, %v540
    %542 = vmatprep.mubr.bf16.mxu0 0
    %543 = vmatmul.mubr.bf16.gmra.mrb[0].mxu0 %v180
    %v544 = vpop.f32.mrb[0].mxu0
    %v545 = vadd.f32 %v144, %v544
    %v546 = vpop.f32.mrb[0].mxu0
    %v547 = vadd.f32 %v148, %v546
    %v548 = vpop.f32.mrb[0].mxu0
    %v549 = vadd.f32 %v144, %v548
    %v550 = vpop.f32.mrb[0].mxu0
    %v551 = vadd.f32 %v148, %v550
    %552 = vmatprep.mubr.bf16.mxu0 0
    %553 = vmatmul.mubr.bf16.gmra.mrb[0].mxu0 %v181
    %v554 = vpop.f32.mrb[0].mxu0
    %v555 = vadd.f32 %v144, %v554
    %v556 = vpop.f32.mrb[0].mxu0
    %v557 = vadd.f32 %v148, %v556
    %v558 = vpop.f32.mrb[0].mxu0
    %v559 = vadd.f32 %v144, %v558
    %v560 = vpop.f32.mrb[0].mxu0
    %v561 = vadd.f32 %v148, %v560
    %562 = vmatprep.mubr.bf16.mxu0 0
    %563 = vmatmul.mubr.bf16.gmra.mrb[0].mxu0 %v182
    %v564 = vpop.f32.mrb[0].mxu0
    %v565 = vadd.f32 %v144, %v564
    %v566 = vpop.f32.mrb[0].mxu0
    %v567 = vadd.f32 %v148, %v566
    %v568 = vpop.f32.mrb[0].mxu0
    %v569 = vadd.f32 %v144, %v568
    %v570 = vpop.f32.mrb[0].mxu0
    %v571 = vadd.f32 %v148, %v570
    %572 = vdwg.mxu0
    %573 = vmatprep.subr.bf16.mxu0 %v336
    %574 = vmatpush1.bf16.msra.mxu0 %v335
    %575 = vmatprep.subr.bf16.mxu0 %v342
    %576 = vmatpush1.bf16.msra.mxu0 %v341
    %577 = vmatprep.subr.bf16.mxu0 %v348
    %578 = vmatpush1.bf16.msra.mxu0 %v347
    %579 = vmatprep.subr.bf16.mxu0 %v354
    %580 = vmatpush1.bf16.msra.mxu0 %v353
    %581 = vmatprep.subr.bf16.mxu0 %v360
    %582 = vmatpush1.bf16.msra.mxu0 %v359
    %583 = vmatprep.subr.bf16.mxu0 %v366
    %584 = vmatpush1.bf16.msra.mxu0 %v365
    %585 = vmatprep.subr.bf16.mxu0 %v372
    %586 = vmatpush1.bf16.msra.mxu0 %v371
    %587 = vmatprep.subr.bf16.mxu0 %v378
    %588 = vmatpush1.bf16.msra.mxu0 %v377
    %589 = vmatprep.subr.bf16.mxu0 0
    %590 = vmatpush1.bf16.msra.mxu0 0
    %591 = vmatprep.subr.bf16.mxu0 0
    %592 = vmatpush1.bf16.msra.mxu0 0
    %593 = vmatprep.subr.bf16.mxu0 0
    %594 = vmatpush1.bf16.msra.mxu0 0
    %595 = vmatprep.subr.bf16.mxu0 0
    %596 = vmatpush1.bf16.msra.mxu0 0
    %597 = vmatprep.subr.bf16.mxu0 0
    %598 = vmatpush1.bf16.msra.mxu0 0
    %599 = vmatprep.subr.bf16.mxu0 0
    %600 = vmatpush1.bf16.msra.mxu0 0
    %601 = vmatprep.subr.bf16.mxu0 0
    %602 = vmatpush1.bf16.msra.mxu0 0
    %603 = vmatprep.subr.bf16.mxu0 0
    %604 = vmatpush1.bf16.msra.mxu0 0
    %605 = vmatprep.mubr.bf16.mxu0 0
    %606 = vmatmul.mubr.bf16.gmra.mrb[0].mxu0 %v179
    %v607 = vpop.f32.mrb[0].mxu0
    %v608 = vadd.f32 %v152, %v607
    %v609 = vpop.f32.mrb[0].mxu0
    %v610 = vadd.f32 %v156, %v609
    %v611 = vpop.f32.mrb[0].mxu0
    %v612 = vadd.f32 %v152, %v611
    %v613 = vpop.f32.mrb[0].mxu0
    %v614 = vadd.f32 %v156, %v613
    %615 = vmatprep.mubr.bf16.mxu0 0
    %616 = vmatmul.mubr.bf16.gmra.mrb[0].mxu0 %v180
    %v617 = vpop.f32.mrb[0].mxu0
    %v618 = vadd.f32 %v152, %v617
    %v619 = vpop.f32.mrb[0].mxu0
    %v620 = vadd.f32 %v156, %v619
    %v621 = vpop.f32.mrb[0].mxu0
    %v622 = vadd.f32 %v152, %v621
    %v623 = vpop.f32.mrb[0].mxu0
    %v624 = vadd.f32 %v156, %v623
    %625 = vmatprep.mubr.bf16.mxu0 0
    %626 = vmatmul.mubr.bf16.gmra.mrb[0].mxu0 %v181
    %v627 = vpop.f32.mrb[0].mxu0
    %v628 = vadd.f32 %v152, %v627
    %v629 = vpop.f32.mrb[0].mxu0
    %v630 = vadd.f32 %v156, %v629
    %v631 = vpop.f32.mrb[0].mxu0
    %v632 = vadd.f32 %v152, %v631
    %v633 = vpop.f32.mrb[0].mxu0
    %v634 = vadd.f32 %v156, %v633
    %635 = vmatprep.mubr.bf16.mxu0 0
    %636 = vmatmul.mubr.bf16.gmra.mrb[0].mxu0 %v182
    %v637 = vpop.f32.mrb[0].mxu0
    %v638 = vadd.f32 %v152, %v637
    %v639 = vpop.f32.mrb[0].mxu0
    %v640 = vadd.f32 %v156, %v639
    %v641 = vpop.f32.mrb[0].mxu0
    %v642 = vadd.f32 %v152, %v641
    %v643 = vpop.f32.mrb[0].mxu0
    %v644 = vadd.f32 %v156, %v643
    %645 = vdwg.mxu0
    %v646 = vxor.u32 %v462, 2147483648
    %v647 = vxor.u32 %v464, 2147483648
    %v648 = vxor.u32 %v535, 2147483648
    %v649 = vxor.u32 %v466, 2147483648
    %v650 = vxor.u32 %v468, 2147483648
    %v651 = vxor.u32 %v539, 2147483648
    %v652 = vxor.u32 %v472, 2147483648
    %v653 = vxor.u32 %v474, 2147483648
    %v654 = vxor.u32 %v545, 2147483648
    %v655 = vxor.u32 %v476, 2147483648
    %v656 = vxor.u32 %v478, 2147483648
    %v657 = vxor.u32 %v549, 2147483648
    %v658 = vxor.u32 %v482, 2147483648
    %v659 = vxor.u32 %v484, 2147483648
    %v660 = vxor.u32 %v555, 2147483648
    %v661 = vxor.u32 %v486, 2147483648
    %v662 = vxor.u32 %v488, 2147483648
    %v663 = vxor.u32 %v559, 2147483648
    %v664 = vxor.u32 %v492, 2147483648
    %v665 = vxor.u32 %v494, 2147483648
    %v666 = vxor.u32 %v565, 2147483648
    %v667 = vxor.u32 %v496, 2147483648
    %v668 = vxor.u32 %v498, 2147483648
    %v669 = vxor.u32 %v569, 2147483648
    %v670 = vmul.f32 %v646, 1.442695
    %v671 = vpow.pop %v670
    %v672 = vmul.f32 %v647, 1.442695
    %v673 = vpow.pop %v672
    %v674 = vmul.f32 %v648, 1.442695
    %v675 = vpow.pop %v674
    %v676 = vmul.f32 %v649, 1.442695
    %v677 = vpow.pop %v676
    %v678 = vmul.f32 %v650, 1.442695
    %v679 = vpow.pop %v678
    %v680 = vmul.f32 %v651, 1.442695
    %v681 = vpow.pop %v680
    %v682 = vmul.f32 %v652, 1.442695
    %v683 = vpow.pop %v682
    %v684 = vmul.f32 %v653, 1.442695
    %v685 = vpow.pop %v684
    %v686 = vmul.f32 %v654, 1.442695
    %v687 = vpow.pop %v686
    %v688 = vmul.f32 %v655, 1.442695
    %v689 = vpow.pop %v688
    %v690 = vmul.f32 %v656, 1.442695
    %v691 = vpow.pop %v690
    %v692 = vmul.f32 %v657, 1.442695
    %v693 = vpow.pop %v692
    %v694 = vmul.f32 %v658, 1.442695
    %v695 = vpow.pop %v694
    %v696 = vmul.f32 %v659, 1.442695
    %v697 = vpow.pop %v696
    %v698 = vmul.f32 %v660, 1.442695
    %v699 = vpow.pop %v698
    %v700 = vmul.f32 %v661, 1.442695
    %v701 = vpow.pop %v700
    %v702 = vmul.f32 %v662, 1.442695
    %v703 = vpow.pop %v702
    %v704 = vmul.f32 %v663, 1.442695
    %v705 = vpow.pop %v704
    %v706 = vmul.f32 %v664, 1.442695
    %v707 = vpow.pop %v706
    %v708 = vmul.f32 %v665, 1.442695
    %v709 = vpow.pop %v708
    %v710 = vmul.f32 %v666, 1.442695
    %v711 = vpow.pop %v710
    %v712 = vmul.f32 %v667, 1.442695
    %v713 = vpow.pop %v712
    %v714 = vmul.f32 %v668, 1.442695
    %v715 = vpow.pop %v714
    %v716 = vmul.f32 %v669, 1.442695
    %v717 = vpow.pop %v716
    %v718 = vadd.f32 %v671, 1.0
    %v719 = vadd.f32 %v673, 1.0
    %v720 = vadd.f32 %v675, 1.0
    %v721 = vadd.f32 %v677, 1.0
    %v722 = vadd.f32 %v679, 1.0
    %v723 = vadd.f32 %v681, 1.0
    %v724 = vadd.f32 %v683, 1.0
    %v725 = vadd.f32 %v685, 1.0
    %v726 = vadd.f32 %v687, 1.0
    %v727 = vadd.f32 %v689, 1.0
    %v728 = vadd.f32 %v691, 1.0
    %v729 = vadd.f32 %v693, 1.0
    %v730 = vadd.f32 %v695, 1.0
    %v731 = vadd.f32 %v697, 1.0
    %v732 = vadd.f32 %v699, 1.0
    %v733 = vadd.f32 %v701, 1.0
    %v734 = vadd.f32 %v703, 1.0
    %v735 = vadd.f32 %v705, 1.0
    %v736 = vadd.f32 %v707, 1.0
    %v737 = vadd.f32 %v709, 1.0
    %v738 = vadd.f32 %v711, 1.0
    %v739 = vadd.f32 %v713, 1.0
    %v740 = vadd.f32 %v715, 1.0
    %v741 = vadd.f32 %v717, 1.0
    %v742 = vrcp.pop %v718
    %v743 = vmul.f32 1.0, %v742
    %v744 = vrcp.pop %v719
    %v745 = vmul.f32 1.0, %v744
    %v746 = vrcp.pop %v720
    %v747 = vmul.f32 1.0, %v746
    %v748 = vrcp.pop %v721
    %v749 = vmul.f32 1.0, %v748
    %v750 = vrcp.pop %v722
    %v751 = vmul.f32 1.0, %v750
    %v752 = vrcp.pop %v723
    %v753 = vmul.f32 1.0, %v752
    %v754 = vrcp.pop %v724
    %v755 = vmul.f32 1.0, %v754
    %v756 = vrcp.pop %v725
    %v757 = vmul.f32 1.0, %v756
    %v758 = vrcp.pop %v726
    %v759 = vmul.f32 1.0, %v758
    %v760 = vrcp.pop %v727
    %v761 = vmul.f32 1.0, %v760
    %v762 = vrcp.pop %v728
    %v763 = vmul.f32 1.0, %v762
    %v764 = vrcp.pop %v729
    %v765 = vmul.f32 1.0, %v764
    %v766 = vrcp.pop %v730
    %v767 = vmul.f32 1.0, %v766
    %v768 = vrcp.pop %v731
    %v769 = vmul.f32 1.0, %v768
    %v770 = vrcp.pop %v732
    %v771 = vmul.f32 1.0, %v770
    %v772 = vrcp.pop %v733
    %v773 = vmul.f32 1.0, %v772
    %v774 = vrcp.pop %v734
    %v775 = vmul.f32 1.0, %v774
    %v776 = vrcp.pop %v735
    %v777 = vmul.f32 1.0, %v776
    %v778 = vrcp.pop %v736
    %v779 = vmul.f32 1.0, %v778
    %v780 = vrcp.pop %v737
    %v781 = vmul.f32 1.0, %v780
    %v782 = vrcp.pop %v738
    %v783 = vmul.f32 1.0, %v782
    %v784 = vrcp.pop %v739
    %v785 = vmul.f32 1.0, %v784
    %v786 = vrcp.pop %v740
    %v787 = vmul.f32 1.0, %v786
    %v788 = vrcp.pop %v741
    %v789 = vmul.f32 1.0, %v788
    %v790 = vmul.f32 %v462, %v743
    %v791 = vmul.f32 %v464, %v745
    %v792 = vmul.f32 %v535, %v747
    %v793 = vmul.f32 %v466, %v749
    %v794 = vmul.f32 %v468, %v751
    %v795 = vmul.f32 %v539, %v753
    %v796 = vmul.f32 %v472, %v755
    %v797 = vmul.f32 %v474, %v757
    %v798 = vmul.f32 %v545, %v759
    %v799 = vmul.f32 %v476, %v761
    %v800 = vmul.f32 %v478, %v763
    %v801 = vmul.f32 %v549, %v765
    %v802 = vmul.f32 %v482, %v767
    %v803 = vmul.f32 %v484, %v769
    %v804 = vmul.f32 %v555, %v771
    %v805 = vmul.f32 %v486, %v773
    %v806 = vmul.f32 %v488, %v775
    %v807 = vmul.f32 %v559, %v777
    %v808 = vmul.f32 %v492, %v779
    %v809 = vmul.f32 %v494, %v781
    %v810 = vmul.f32 %v565, %v783
    %v811 = vmul.f32 %v496, %v785
    %v812 = vmul.f32 %v498, %v787
    %v813 = vmul.f32 %v569, %v789
    %v814 = vmul.f32 %v790, %v537
    %v815 = vmul.f32 %v791, %v608
    %v816 = vmul.f32 %v792, %v610
    %v817 = vmul.f32 %v793, %v541
    %v818 = vmul.f32 %v794, %v612
    %v819 = vmul.f32 %v795, %v614
    %v820 = vmul.f32 %v796, %v547
    %v821 = vmul.f32 %v797, %v618
    %v822 = vmul.f32 %v798, %v620
    %v823 = vmul.f32 %v799, %v551
    %v824 = vmul.f32 %v800, %v622
    %v825 = vmul.f32 %v801, %v624
    %v826 = vmul.f32 %v802, %v557
    %v827 = vmul.f32 %v803, %v628
    %v828 = vmul.f32 %v804, %v630
    %v829 = vmul.f32 %v805, %v561
    %v830 = vmul.f32 %v806, %v632
    %v831 = vmul.f32 %v807, %v634
    %v832 = vmul.f32 %v808, %v567
    %v833 = vmul.f32 %v809, %v638
    %v834 = vmul.f32 %v810, %v640
    %v835 = vmul.f32 %v811, %v571
    %v836 = vmul.f32 %v812, %v642
    %v837 = vmul.f32 %v813, %v644
    %v838 = vld [vmem:[#allocation2] sm:$0xff]
    %v839 = vld [vmem:[#allocation2 + $0x8] sm:$0xff]
    %v840 = vld [vmem:[#allocation2 + $0x10] sm:$0xff]
    %v841 = vld [vmem:[#allocation2 + $0x18] sm:$0xff]
    %v842 = vld [vmem:[#allocation2 + $0x20] sm:$0xff]
    %v843 = vld [vmem:[#allocation2 + $0x28] sm:$0xff]
    %v844 = vld [vmem:[#allocation2 + $0x30] sm:$0xff]
    %v845 = vld [vmem:[#allocation2 + $0x38] sm:$0xff]
    %v846 = vpack.c.bf16 %v817, %v814
    %v847 = vpack.c.bf16 %v818, %v815
    %v848 = vpack.c.bf16 %v819, %v816
    %v849 = vpack.c.bf16 %v823, %v820
    %v850 = vpack.c.bf16 %v824, %v821
    %v851 = vpack.c.bf16 %v825, %v822
    %v852 = vpack.c.bf16 %v829, %v826
    %v853 = vpack.c.bf16 %v830, %v827
    %v854 = vpack.c.bf16 %v831, %v828
    %v855 = vpack.c.bf16 %v835, %v832
    %v856 = vpack.c.bf16 %v836, %v833
    %v857 = vpack.c.bf16 %v837, %v834
    %v858 = vld [vmem:[#allocation8] sm:$0xf]
    %v859 = vld [vmem:[#allocation8 + $0x4] sm:$0xf]
    %v860 = vld [vmem:[#allocation8 + $0x8] sm:$0xf]
    %v861 = vld [vmem:[#allocation8 + $0xc] sm:$0xf]
    %v862 = vld [vmem:[#allocation8 + $0x10] sm:$0xf]
    %v863 = vld [vmem:[#allocation8 + $0x14] sm:$0xf]
    %v864 = vld [vmem:[#allocation8 + $0x18] sm:$0xf]
    %v865 = vld [vmem:[#allocation8 + $0x1c] sm:$0xf]
    %v866 = vld [vmem:[#allocation8 + $0x20] sm:$0xf]
    %v867 = vld [vmem:[#allocation8 + $0x24] sm:$0xf]
    %v868 = vld [vmem:[#allocation8 + $0x28] sm:$0xf]
    %v869 = vld [vmem:[#allocation8 + $0x2c] sm:$0xf]
    %v870 = vld [vmem:[#allocation8 + $0x30] sm:$0xf]
    %v871 = vld [vmem:[#allocation8 + $0x34] sm:$0xf]
    %v872 = vld [vmem:[#allocation8 + $0x38] sm:$0xf]
    %v873 = vld [vmem:[#allocation8 + $0x3c] sm:$0xf]
    %v874 = vld [vmem:[#allocation8 + $0x40] sm:$0xf]
    %v875 = vld [vmem:[#allocation8 + $0x44] sm:$0xf]
    %v876 = vld [vmem:[#allocation8 + $0x48] sm:$0xf]
    %v877 = vld [vmem:[#allocation8 + $0x4c] sm:$0xf]
    %v878 = vld [vmem:[#allocation8 + $0x50] sm:$0xf]
    %v879 = vld [vmem:[#allocation8 + $0x54] sm:$0xf]
    %v880 = vld [vmem:[#allocation8 + $0x58] sm:$0xf]
    %v881 = vld [vmem:[#allocation8 + $0x5c] sm:$0xf]
    %v882 = vld [vmem:[#allocation8 + $0x60] sm:$0xf]
    %v883 = vld [vmem:[#allocation8 + $0x64] sm:$0xf]
    %v884 = vld [vmem:[#allocation8 + $0x68] sm:$0xf]
    %v885 = vld [vmem:[#allocation8 + $0x6c] sm:$0xf]
    %v886 = vld [vmem:[#allocation8 + $0x70] sm:$0xf]
    %v887 = vld [vmem:[#allocation8 + $0x74] sm:$0xf]
    %v888 = vld [vmem:[#allocation8 + $0x78] sm:$0xf]
    %v889 = vld [vmem:[#allocation8 + $0x7c] sm:$0xf]
    %v890 = vld [vmem:[#allocation8 + $0x80] sm:$0xf]
    %v891 = vld [vmem:[#allocation8 + $0x84] sm:$0xf]
    %v892 = vld [vmem:[#allocation8 + $0x88] sm:$0xf]
    %v893 = vld [vmem:[#allocation8 + $0x8c] sm:$0xf]
    %v894 = vld [vmem:[#allocation8 + $0x90] sm:$0xf]
    %v895 = vld [vmem:[#allocation8 + $0x94] sm:$0xf]
    %v896 = vld [vmem:[#allocation8 + $0x98] sm:$0xf]
    %v897 = vld [vmem:[#allocation8 + $0x9c] sm:$0xf]
    %v898 = vld [vmem:[#allocation8 + $0xa0] sm:$0xf]
    %v899 = vld [vmem:[#allocation8 + $0xa4] sm:$0xf]
    %v900 = vld [vmem:[#allocation8 + $0xa8] sm:$0xf]
    %v901 = vld [vmem:[#allocation8 + $0xac] sm:$0xf]
    %v902 = vld [vmem:[#allocation8 + $0xb0] sm:$0xf]
    %v903 = vld [vmem:[#allocation8 + $0xb4] sm:$0xf]
    %v904 = vld [vmem:[#allocation8 + $0xb8] sm:$0xf]
    %v905 = vld [vmem:[#allocation8 + $0xbc] sm:$0xf]
    %v954 = vunpack.c.l.b16 %v858
    %v955 = vunpack.c.l.b16 %v859
    %v956 = vunpack.c.l.b16 %v860
    %v957 = vunpack.c.l.b16 %v861
    %v958 = vunpack.c.l.b16 %v862
    %v959 = vunpack.c.l.b16 %v863
    %v960 = vunpack.c.l.b16 %v864
    %v961 = vunpack.c.l.b16 %v865
    %v962 = vunpack.c.l.b16 %v866
    %v963 = vunpack.c.l.b16 %v867
    %v964 = vunpack.c.l.b16 %v868
    %v965 = vunpack.c.l.b16 %v869
    %v966 = vunpack.c.l.b16 %v870
    %v967 = vunpack.c.l.b16 %v871
    %v968 = vunpack.c.l.b16 %v872
    %v969 = vunpack.c.l.b16 %v873
    %v970 = vunpack.c.l.b16 %v874
    %v971 = vunpack.c.l.b16 %v875
    %v972 = vunpack.c.l.b16 %v876
    %v973 = vunpack.c.l.b16 %v877
    %v974 = vunpack.c.l.b16 %v878
    %v975 = vunpack.c.l.b16 %v879
    %v976 = vunpack.c.l.b16 %v880
    %v977 = vunpack.c.l.b16 %v881
    %v978 = vunpack.c.l.b16 %v882
    %v979 = vunpack.c.l.b16 %v883
    %v980 = vunpack.c.l.b16 %v884
    %v981 = vunpack.c.l.b16 %v885
    %v982 = vunpack.c.l.b16 %v886
    %v983 = vunpack.c.l.b16 %v887
    %v984 = vunpack.c.l.b16 %v888
    %v985 = vunpack.c.l.b16 %v889
    %v986 = vunpack.c.l.b16 %v890
    %v987 = vunpack.c.l.b16 %v891
    %v988 = vunpack.c.l.b16 %v892
    %v989 = vunpack.c.l.b16 %v893
    %v990 = vunpack.c.l.b16 %v894
    %v991 = vunpack.c.l.b16 %v895
    %v992 = vunpack.c.l.b16 %v896
    %v993 = vunpack.c.l.b16 %v897
    %v994 = vunpack.c.l.b16 %v898
    %v995 = vunpack.c.l.b16 %v899
    %v996 = vunpack.c.l.b16 %v900
    %v997 = vunpack.c.l.b16 %v901
    %v998 = vunpack.c.l.b16 %v902
    %v999 = vunpack.c.l.b16 %v903
    %v1000 = vunpack.c.l.b16 %v904
    %v1001 = vunpack.c.l.b16 %v905
    %v1002 = vpack.c.b16 %v955, %v954
    %v1003 = vpack.c.b16 %v957, %v956
    %v1004 = vpack.c.b16 %v959, %v958
    %v1005 = vpack.c.b16 %v961, %v960
    %v1006 = vpack.c.b16 %v963, %v962
    %v1007 = vpack.c.b16 %v965, %v964
    %v1008 = vpack.c.b16 %v967, %v966
    %v1009 = vpack.c.b16 %v969, %v968
    %v1010 = vpack.c.b16 %v971, %v970
    %v1011 = vpack.c.b16 %v973, %v972
    %v1012 = vpack.c.b16 %v975, %v974
    %v1013 = vpack.c.b16 %v977, %v976
    %v1014 = vpack.c.b16 %v979, %v978
    %v1015 = vpack.c.b16 %v981, %v980
    %v1016 = vpack.c.b16 %v983, %v982
    %v1017 = vpack.c.b16 %v985, %v984
    %v1018 = vpack.c.b16 %v987, %v986
    %v1019 = vpack.c.b16 %v989, %v988
    %v1020 = vpack.c.b16 %v991, %v990
    %v1021 = vpack.c.b16 %v993, %v992
    %v1022 = vpack.c.b16 %v995, %v994
    %v1023 = vpack.c.b16 %v997, %v996
    %v1024 = vpack.c.b16 %v999, %v998
    %v1025 = vpack.c.b16 %v1001, %v1000
    %1050 = vmatprep.subr.bf16.mxu0 0
    %1051 = vmatpush1.bf16.msra.mxu0 %v1002
    %1052 = vmatprep.subr.bf16.mxu0 0
    %1053 = vmatpush1.bf16.msra.mxu0 %v1003
    %1054 = vmatprep.subr.bf16.mxu0 0
    %1055 = vmatpush1.bf16.msra.mxu0 %v1004
    %1056 = vmatprep.subr.bf16.mxu0 0
    %1057 = vmatpush1.bf16.msra.mxu0 %v1005
    %1058 = vmatprep.subr.bf16.mxu0 0
    %1059 = vmatpush1.bf16.msra.mxu0 %v1006
    %1060 = vmatprep.subr.bf16.mxu0 0
    %1061 = vmatpush1.bf16.msra.mxu0 %v1007
    %1062 = vmatprep.subr.bf16.mxu0 0
    %1063 = vmatpush1.bf16.msra.mxu0 %v1008
    %1064 = vmatprep.subr.bf16.mxu0 0
    %1065 = vmatpush1.bf16.msra.mxu0 %v1009
    %1066 = vmatprep.subr.bf16.mxu0 0
    %1067 = vmatpush1.bf16.msra.mxu0 %v1010
    %1068 = vmatprep.subr.bf16.mxu0 0
    %1069 = vmatpush1.bf16.msra.mxu0 %v1011
    %1070 = vmatprep.subr.bf16.mxu0 0
    %1071 = vmatpush1.bf16.msra.mxu0 %v1012
    %1072 = vmatprep.subr.bf16.mxu0 0
    %1073 = vmatpush1.bf16.msra.mxu0 %v1013
    %1074 = vmatprep.subr.bf16.mxu0 0
    %1075 = vmatpush1.bf16.msra.mxu0 %v1014
    %1076 = vmatprep.subr.bf16.mxu0 0
    %1077 = vmatpush1.bf16.msra.mxu0 %v1015
    %1078 = vmatprep.subr.bf16.mxu0 0
    %1079 = vmatpush1.bf16.msra.mxu0 %v1016
    %1080 = vmatprep.subr.bf16.mxu0 0
    %1081 = vmatpush1.bf16.msra.mxu0 %v1017
    %1082 = vmatprep.mubr.bf16.mxu0 %v847
    %1083 = vmatmul.mubr.bf16.gmra.mrb[0].mxu0 %v846
    %v1084 = vpop.f32.mrb[0].mxu0
    %v1085 = vadd.f32 0.0, %v1084
    %v1086 = vpop.f32.mrb[0].mxu0
    %v1087 = vpop.f32.mrb[0].mxu0
    %v1088 = vadd.f32 0.0, %v1087
    %v1089 = vpop.f32.mrb[0].mxu0
    %1090 = vmatprep.mubr.bf16.mxu0 %v850
    %1091 = vmatmul.mubr.bf16.gmra.mrb[0].mxu0 %v849
    %v1092 = vpop.f32.mrb[0].mxu0
    %v1093 = vadd.f32 0.0, %v1092
    %v1094 = vpop.f32.mrb[0].mxu0
    %v1095 = vpop.f32.mrb[0].mxu0
    %v1096 = vadd.f32 0.0, %v1095
    %v1097 = vpop.f32.mrb[0].mxu0
    %1098 = vmatprep.mubr.bf16.mxu0 %v853
    %1099 = vmatmul.mubr.bf16.gmra.mrb[0].mxu0 %v852
    %v1100 = vpop.f32.mrb[0].mxu0
    %v1101 = vadd.f32 0.0, %v1100
    %v1102 = vpop.f32.mrb[0].mxu0
    %v1103 = vpop.f32.mrb[0].mxu0
    %v1104 = vadd.f32 0.0, %v1103
    %v1105 = vpop.f32.mrb[0].mxu0
    %1106 = vmatprep.mubr.bf16.mxu0 %v856
    %1107 = vmatmul.mubr.bf16.gmra.mrb[0].mxu0 %v855
    %v1108 = vpop.f32.mrb[0].mxu0
    %v1109 = vadd.f32 0.0, %v1108
    %v1110 = vpop.f32.mrb[0].mxu0
    %v1111 = vpop.f32.mrb[0].mxu0
    %v1112 = vadd.f32 0.0, %v1111
    %v1113 = vpop.f32.mrb[0].mxu0
    %1114 = vdwg.mxu0
    %1115 = vmatprep.subr.bf16.mxu0 0
    %1116 = vmatpush1.bf16.msra.mxu0 %v1018
    %1117 = vmatprep.subr.bf16.mxu0 0
    %1118 = vmatpush1.bf16.msra.mxu0 %v1019
    %1119 = vmatprep.subr.bf16.mxu0 0
    %1120 = vmatpush1.bf16.msra.mxu0 %v1020
    %1121 = vmatprep.subr.bf16.mxu0 0
    %1122 = vmatpush1.bf16.msra.mxu0 %v1021
    %1123 = vmatprep.subr.bf16.mxu0 0
    %1124 = vmatpush1.bf16.msra.mxu0 %v1022
    %1125 = vmatprep.subr.bf16.mxu0 0
    %1126 = vmatpush1.bf16.msra.mxu0 %v1023
    %1127 = vmatprep.subr.bf16.mxu0 0
    %1128 = vmatpush1.bf16.msra.mxu0 %v1024
    %1129 = vmatprep.subr.bf16.mxu0 0
    %1130 = vmatpush1.bf16.msra.mxu0 %v1025
    %1131 = vmatprep.subr.bf16.mxu0 0
    %1132 = vmatpush1.bf16.msra.mxu0 0
    %1133 = vmatprep.subr.bf16.mxu0 0
    %1134 = vmatpush1.bf16.msra.mxu0 0
    %1135 = vmatprep.subr.bf16.mxu0 0
    %1136 = vmatpush1.bf16.msra.mxu0 0
    %1137 = vmatprep.subr.bf16.mxu0 0
    %1138 = vmatpush1.bf16.msra.mxu0 0
    %1139 = vmatprep.subr.bf16.mxu0 0
    %1140 = vmatpush1.bf16.msra.mxu0 0
    %1141 = vmatprep.subr.bf16.mxu0 0
    %1142 = vmatpush1.bf16.msra.mxu0 0
    %1143 = vmatprep.subr.bf16.mxu0 0
    %1144 = vmatpush1.bf16.msra.mxu0 0
    %1145 = vmatprep.subr.bf16.mxu0 0
    %1146 = vmatpush1.bf16.msra.mxu0 0
    %1147 = vmatprep.mubr.bf16.mxu0 0
    %1148 = vmatmul.mubr.bf16.gmra.mrb[0].mxu0 %v848
    %v1149 = vpop.f32.mrb[0].mxu0
    %v1150 = vadd.f32 %v1085, %v1149
    %v1151 = vpop.f32.mrb[0].mxu0
    %v1152 = vpop.f32.mrb[0].mxu0
    %v1153 = vadd.f32 %v1088, %v1152
    %v1154 = vpop.f32.mrb[0].mxu0
    %1155 = vmatprep.mubr.bf16.mxu0 0
    %1156 = vmatmul.mubr.bf16.gmra.mrb[0].mxu0 %v851
    %v1157 = vpop.f32.mrb[0].mxu0
    %v1158 = vadd.f32 %v1093, %v1157
    %v1159 = vpop.f32.mrb[0].mxu0
    %v1160 = vpop.f32.mrb[0].mxu0
    %v1161 = vadd.f32 %v1096, %v1160
    %v1162 = vpop.f32.mrb[0].mxu0
    %1163 = vmatprep.mubr.bf16.mxu0 0
    %1164 = vmatmul.mubr.bf16.gmra.mrb[0].mxu0 %v854
    %v1165 = vpop.f32.mrb[0].mxu0
    %v1166 = vadd.f32 %v1101, %v1165
    %v1167 = vpop.f32.mrb[0].mxu0
    %v1168 = vpop.f32.mrb[0].mxu0
    %v1169 = vadd.f32 %v1104, %v1168
    %v1170 = vpop.f32.mrb[0].mxu0
    %1171 = vmatprep.mubr.bf16.mxu0 0
    %1172 = vmatmul.mubr.bf16.gmra.mrb[0].mxu0 %v857
    %v1173 = vpop.f32.mrb[0].mxu0
    %v1174 = vadd.f32 %v1109, %v1173
    %v1175 = vpop.f32.mrb[0].mxu0
    %v1176 = vpop.f32.mrb[0].mxu0
    %v1177 = vadd.f32 %v1112, %v1176
    %v1178 = vpop.f32.mrb[0].mxu0
    %1179 = vdwg.mxu0
    %v1180 = vadd.f32 %v838, %v1150
    %v1181 = vadd.f32 %v839, %v1153
    %v1182 = vadd.f32 %v840, %v1158
    %v1183 = vadd.f32 %v841, %v1161
    %v1184 = vadd.f32 %v842, %v1166
    %v1185 = vadd.f32 %v843, %v1169
    %v1186 = vadd.f32 %v844, %v1174
    %v1187 = vadd.f32 %v845, %v1177
    %1188 = vst [vmem:[#allocation2] sm:$0xff] %v1180
    %1189 = vst [vmem:[#allocation2 + $0x8] sm:$0xff] %v1181
    %1190 = vst [vmem:[#allocation2 + $0x10] sm:$0xff] %v1182
    %1191 = vst [vmem:[#allocation2 + $0x18] sm:$0xff] %v1183
    %1192 = vst [vmem:[#allocation2 + $0x20] sm:$0xff] %v1184
    %1193 = vst [vmem:[#allocation2 + $0x28] sm:$0xff] %v1185
    %1194 = vst [vmem:[#allocation2 + $0x30] sm:$0xff] %v1186
    %1195 = vst [vmem:[#allocation2 + $0x38] sm:$0xff] %v1187
    // Predicated region
    $region38: #{tpu_custom_call.1} parent=1 // pred_check
      %p1196 = pneg %p63
    $region39: #{tpu_custom_call.1} parent=1 // pred_check_branch
      %1198 = sbr.rel (%p1196) target = $region41
    $region40: #{tpu_custom_call.1} parent=1 // pred_region
      %v1199 = vld [vmem:[#allocation2] sm:$0xff]
      %v1200 = vld [vmem:[#allocation2 + $0x8] sm:$0xff]
      %v1201 = vld [vmem:[#allocation2 + $0x10] sm:$0xff]
      %v1202 = vld [vmem:[#allocation2 + $0x18] sm:$0xff]
      %v1203 = vld [vmem:[#allocation2 + $0x20] sm:$0xff]
      %v1204 = vld [vmem:[#allocation2 + $0x28] sm:$0xff]
      %v1205 = vld [vmem:[#allocation2 + $0x30] sm:$0xff]
      %v1206 = vld [vmem:[#allocation2 + $0x38] sm:$0xff]
      %v1207 = vld [vmem:[%s4] sm:$0x1]
      %v1209 = vlaneseq
      %v1210 = vshrl.u32 %v1209, 7
      %v1211 = vsub.s32 0, %v1210
      %v1212 = vrot.slane %v1207, %v1211
      %v1214 = vadd.f32 %v1199, %v1212
      %v1215 = vadd.f32 %v1200, %v1212
      %v1216 = vadd.f32 %v1201, %v1212
      %v1217 = vadd.f32 %v1202, %v1212
      %v1218 = vadd.f32 %v1203, %v1212
      %v1219 = vadd.f32 %v1204, %v1212
      %v1220 = vadd.f32 %v1205, %v1212
      %v1221 = vadd.f32 %v1206, %v1212
      %1222 = vst [vmem:[#allocation9] sm:$0xff] %v1214
      %1223 = vst [vmem:[#allocation9 + $0x8] sm:$0xff] %v1215
      %1224 = vst [vmem:[#allocation9 + $0x10] sm:$0xff] %v1216
      %1225 = vst [vmem:[#allocation9 + $0x18] sm:$0xff] %v1217
      %1226 = vst [vmem:[#allocation9 + $0x20] sm:$0xff] %v1218
      %1227 = vst [vmem:[#allocation9 + $0x28] sm:$0xff] %v1219
      %1228 = vst [vmem:[#allocation9 + $0x30] sm:$0xff] %v1220
      %1229 = vst [vmem:[#allocation9 + $0x38] sm:$0xff] %v1221
    $region41: #{tpu_custom_call.1} parent=1 // pred_fallthru
      _
    // Predicated region
    $region42: #{tpu_custom_call.1} parent=1 // pred_check
      _
    $region43: #{tpu_custom_call.1} parent=1 // pred_check_branch
      %1231 = sbr.rel (0) target = $region45
    $region44: #{tpu_custom_call.1} parent=1 // pred_region
      %s1233 = ssub.s32 1024, 1024
      %1234 = vsyncadd [#allocation5], %s1233
      %s1235 = sshll.u32 [#allocation9], 4
      %s1236 = int_to_ptr.vmem [resolvable:$true] %s1235
      %1241 = dma.vmem_to_hbm [thread:$0]  %s1236, 1024, %s5, [#allocation5], 128, 128, 8
    $region45: #{tpu_custom_call.1} parent=1 // pred_fallthru
      _
    // Predicated region
    $region46: #{tpu_custom_call.1} parent=1 // pred_check
      _
    $region47: #{tpu_custom_call.1} parent=1 // pred_check_branch
      %1243 = sbr.rel (0) target = $region49
    $region48: #{tpu_custom_call.1} parent=1 // pred_region
      %1244 = dma.done [#allocation5], 1024
    $region49: #{tpu_custom_call.1} parent=1 // pred_fallthru
      _
    %1245 = vsyncpa [#allocation4], 1
    %1246 = vsyncpa [#allocation7], 1
    %1247 = vsyncpa [#allocation5], 1

</llo_original>
